<compile_context>
chip_gen: v7x
topology: tpu7x:2x2x1
jax: 0.10.0
libtpu: 0.0.40
codegen_flags: <defaults>
</compile_context>

<pallas_src>
import functools
import math

import jax
import jax.numpy as jnp
from jax import lax
from jax.experimental import pallas as pl
from jax.experimental.pallas import tpu as pltpu


# ----------------------------------------------------------------------------
# Kernels
# ----------------------------------------------------------------------------
def _logp_tile(x_ref, c_ref, a_ref, b_ref):
    """Per-sample log-prob for one (TB, D) tile (flow log-det already in c0).

    x_ref: (TB, D) f32/bf16  embeddings (X == E for this flow)
    c_ref: (TB, 3) f32       hoisted per-sample constants [c0, c1, c2]
    a_ref: (1, D)  f32       composed flow scale  exp(-sum_k s_k)
    b_ref: (1, D)  f32       composed flow shift
    returns: (TB, 1) f32
    """
    x = x_ref[...].astype(jnp.float32)            # upcast after DMA (bf16 ok)
    z = x * a_ref[...] + b_ref[...]               # collapsed K-flow inverse
    s1 = jnp.sum(z, axis=1, keepdims=True)        # (TB, 1)
    s2 = jnp.sum(z * z, axis=1, keepdims=True)    # (TB, 1)
    c = c_ref[...]
    # TODO(synk): if a bundle dump shows the VALU/XLU slot binding on v7x,
    # offload s1/s2 to the idle MXU via jnp.dot(z, ones((D,1))).
    return c[:, 0:1] + c[:, 1:2] * s1 + c[:, 2:3] * s2


def _calas_logp_kernel(x_ref, c_ref, a_ref, b_ref, out_ref):
    out_ref[...] = _logp_tile(x_ref, c_ref, a_ref, b_ref)


def _calas_loss_kernel(x_ref, c_ref, a_ref, b_ref, out_ref, *, batch, tile):
    """Writes this tile's partial sum of log-probs to its own (1,1,1) slot.

    No cross-tile accumulator -> batch axis stays 'parallel' (v7x megacore).
    """
    i = pl.program_id(0)
    logp = _logp_tile(x_ref, c_ref, a_ref, b_ref)      # (TB, 1)
    # Mask padded rows of the (possibly partial) last tile.
    row = i * tile + lax.broadcasted_iota(jnp.int32, logp.shape, 0)
    logp = jnp.where(row < batch, logp, 0.0)
    out_ref[...] = jnp.sum(logp).reshape(1, 1, 1)


# ----------------------------------------------------------------------------
# Wrapper-side precomputation (hoisted out of the kernel hot path)
# ----------------------------------------------------------------------------
def _compose_flows(flow_s, flow_t):
    """Collapse K element-wise affine inverse steps into z = x*a + b."""
    K, D = flow_s.shape
    a = jnp.ones((D,), jnp.float32)
    b = jnp.zeros((D,), jnp.float32)
    for k in range(K - 1, -1, -1):               # K small & static -> unrolled
        e = jnp.exp(-flow_s[k].astype(jnp.float32))
        a = a * e
        b = (b - flow_t[k].astype(jnp.float32)) * e
    log_det = -jnp.sum(flow_s.astype(jnp.float32))   # batch-independent scalar
    return a.reshape(1, D), b.reshape(1, D), log_det


def _per_sample_constants(classes, cond_means, cond_log_scales, num_dims,
                          log_det):
    """ctx_endoder + Gaussian/log-det constant hoisting -> (B, 3) [c0, c1, c2]."""
    cls = classes.astype(jnp.int32).reshape(-1)
    loc = cond_means.astype(jnp.float32)[cls]               # (B,)
    ls = cond_log_scales.astype(jnp.float32)[cls]           # (B,)
    inv_var = jnp.exp(-2.0 * ls)
    const = -0.5 * num_dims * math.log(2.0 * math.pi)
    c0 = const + log_det - num_dims * ls - 0.5 * num_dims * loc * loc * inv_var
    c1 = loc * inv_var
    c2 = -0.5 * inv_var
    return jnp.stack([c0, c1, c2], axis=1)                  # (B, 3) f32


def _vmem_config():
    """Generation-aware (working-set budget, vmem_limit_bytes)."""
    cap = None
    try:
        cap = int(getattr(pltpu.get_tpu_info(), "vmem_capacity_bytes"))
    except Exception:
        cap = None
    if cap is None or cap <= 64 * 1024 * 1024:
        # v7x (64 MiB VMEM) or unknown -> conservative.
        return 20 * 1024 * 1024, 32 * 1024 * 1024
    # v5e / v6e: 128 MiB physical VMEM -> larger tiles for HBM utilization.
    return 40 * 1024 * 1024, 64 * 1024 * 1024


def _pick_batch_tile(batch, dims, x_itemsize, out_row_bytes, budget_bytes,
                     is_bf16):
    """Largest aligned batch tile whose double-buffered, lane-padded working
    set fits the budget.  Narrow (TB, k<128) blocks pad to 128 lanes."""
    lane_pad = ((dims + 127) // 128) * 128
    x_row = lane_pad * x_itemsize                 # x tile bytes per row
    c_row = 128 * 4                               # (TB, 3) consts pad to 128 lanes
    per_row = 2 * (x_row + c_row + out_row_bytes)  # x2: double-buffered
    tb = max(1, budget_bytes // per_row)
    if tb >= batch:
        return batch                              # full-extent block is allowed
    align = 32 if is_bf16 else 8                  # bf16 packs 2 rows / sublane
    tb = max(align, (tb // align) * align)
    return min(tb, batch)


def _common_call_args(x, tb, out_row_bytes):
    B, D = x.shape
    grid = (pl.cdiv(B, tb),)
    in_specs = [
        pl.BlockSpec((tb, D), lambda i: (i, 0)),   # x tile (pipelined)
        pl.BlockSpec((tb, 3), lambda i: (i, 0)),   # per-sample constants
        pl.BlockSpec((1, D), lambda i: (0, 0)),    # composed scale (resident)
        pl.BlockSpec((1, D), lambda i: (0, 0)),    # composed shift (resident)
    ]
    cost = pl.CostEstimate(
        flops=6 * B * D,
        transcendentals=0,
        bytes_accessed=(B * D * x.dtype.itemsize + B * 3 * 4 + 2 * D * 4
                        + (B * 4 if out_row_bytes else 4)))
    return grid, in_specs, cost


def _prepare(x, classes, cond_means, cond_log_scales, flow_s, flow_t,
             batch_tile, out_row_bytes):
    B, D = x.shape
    a, b, log_det = _compose_flows(flow_s, flow_t)
    consts = _per_sample_constants(classes, cond_means, cond_log_scales, D,
                                   log_det)
    budget, vmem_limit = _vmem_config()
    is_bf16 = x.dtype == jnp.bfloat16
    tb = (_pick_batch_tile(B, D, x.dtype.itemsize, out_row_bytes, budget,
                           is_bf16)
          if batch_tile is None else batch_tile)
    return a, b, consts, tb, vmem_limit


# ----------------------------------------------------------------------------
# Public entry points
# ----------------------------------------------------------------------------
def calas_log_rel_lik_E(x, classes, cond_means, cond_log_scales,
                        flow_s, flow_t, *, batch_tile=None):
    """Per-sample log_rel_lik_E, shape (B,). x may be f32 or bf16."""
    B, D = x.shape
    a, b, consts, tb, vmem_limit = _prepare(
        x, classes, cond_means, cond_log_scales, flow_s, flow_t, batch_tile,
        out_row_bytes=128 * 4)                    # (TB,1) out block, lane-padded
    grid, in_specs, cost = _common_call_args(x, tb, out_row_bytes=128 * 4)

    out = pl.pallas_call(
        _calas_logp_kernel,
        out_shape=jax.ShapeDtypeStruct((B, 1), jnp.float32),
        grid=grid,
        in_specs=in_specs,
        out_specs=pl.BlockSpec((tb, 1), lambda i: (i, 0)),
        compiler_params=pltpu.CompilerParams(
            dimension_semantics=("parallel",),
            vmem_limit_bytes=vmem_limit),
        cost_estimate=cost,
    )(x, consts, a, b)
    return out[:, 0]                              # log_det already inside c0


def calas_loss(x, classes, cond_means, cond_log_scales, flow_s, flow_t, *,
               batch_tile=None):
    """loss_wrt_E: forward-KL MC estimate = -mean(log_rel_lik_E).

    Per-tile partial sums (parallel grid axis, megacore-friendly on v7x);
    final reduction over the tiny (num_tiles,) vector happens in the wrapper.
    """
    B, D = x.shape
    a, b, consts, tb, vmem_limit = _prepare(
        x, classes, cond_means, cond_log_scales, flow_s, flow_t, batch_tile,
        out_row_bytes=0)                          # output is a per-tile scalar
    grid, in_specs, cost = _common_call_args(x, tb, out_row_bytes=0)
    num_tiles = grid[0]

    partials = pl.pallas_call(
        functools.partial(_calas_loss_kernel, batch=B, tile=tb),
        out_shape=jax.ShapeDtypeStruct((num_tiles, 1, 1), jnp.float32),
        grid=grid,
        in_specs=in_specs,
        out_specs=pl.BlockSpec((1, 1, 1), lambda i: (i, 0, 0)),
        compiler_params=pltpu.CompilerParams(
            dimension_semantics=("parallel",),
            vmem_limit_bytes=vmem_limit),
        cost_estimate=cost,
    )(x, consts, a, b)
    return -(jnp.sum(partials) / B)


# ----------------------------------------------------------------------------
# Pure-JAX reference mirroring the PyTorch semantics (for sanity check)
# ----------------------------------------------------------------------------
def _ref_log_rel_lik_E(x, classes, cond_means, cond_log_scales, flow_s, flow_t):
    B, D = x.shape
    xf = x.astype(jnp.float32)
    loc = cond_means.astype(jnp.float32)[classes][:, None]
    log_scale = cond_log_scales.astype(jnp.float32)[classes][:, None]
    z = xf
    log_det = jnp.zeros((B,), jnp.float32)
    for k in range(flow_s.shape[0] - 1, -1, -1):
        z = (z - flow_t[k]) * jnp.exp(-flow_s[k])
        log_det = log_det - jnp.sum(flow_s[k])
    diff = (z - loc) / jnp.exp(log_scale)
    log_p = (-0.5 * D * math.log(2.0 * math.pi)
             - jnp.sum(log_scale + 0.5 * diff * diff, axis=1))
    return log_p + log_det


if __name__ == "__main__":
    C, K = 4, 3

    # Buffers exactly as CalasFlow.__init__ builds them.
    extent = C * 6.0
    cond_means = jnp.asarray(
        [-0.5 * extent + i * 6.0 + 3.0 for i in range(C)], dtype=jnp.float32)
    cond_log_scales = jnp.log(jnp.asarray([0.5] * C, dtype=jnp.float32))

    key = jax.random.PRNGKey(0)

    # --- test 1: small f32 batch, D not a multiple of 128 (single tile) -------
    B, D = 8, 32
    k1, k2, k3, k4, key = jax.random.split(key, 5)
    x = jax.random.normal(k1, (B, D), dtype=jnp.float32)
    classes = jax.random.randint(k2, (B,), 0, C, dtype=jnp.int32)
    flow_s = 0.1 * jax.random.normal(k3, (K, D), dtype=jnp.float32)
    flow_t = 0.1 * jax.random.normal(k4, (K, D), dtype=jnp.float32)

    logp = jax.block_until_ready(
        calas_log_rel_lik_E(x, classes, cond_means, cond_log_scales,
                            flow_s, flow_t))
    loss = jax.block_until_ready(
        calas_loss(x, classes, cond_means, cond_log_scales, flow_s, flow_t))

    logp_ref = _ref_log_rel_lik_E(x, classes, cond_means, cond_log_scales,
                                  flow_s, flow_t)
    assert jnp.allclose(logp, logp_ref, atol=1e-2, rtol=1e-4), (logp, logp_ref)
    assert jnp.allclose(loss, -jnp.mean(logp_ref), atol=1e-2, rtol=1e-4)

    # --- test 2: bf16 input, tiled batch with a partial last tile -------------
    B2, D2 = 40, 128
    k1, k2, k3, k4, key = jax.random.split(key, 5)
    x2 = jax.random.normal(k1, (B2, D2), dtype=jnp.float32).astype(jnp.bfloat16)
    classes2 = jax.random.randint(k2, (B2,), 0, C, dtype=jnp.int32)
    flow_s2 = 0.1 * jax.random.normal(k3, (K, D2), dtype=jnp.float32)
    flow_t2 = 0.1 * jax.random.normal(k4, (K, D2), dtype=jnp.float32)

    logp2 = jax.block_until_ready(
        calas_log_rel_lik_E(x2, classes2, cond_means, cond_log_scales,
                            flow_s2, flow_t2, batch_tile=16))
    loss2 = jax.block_until_ready(
        calas_loss(x2, classes2, cond_means, cond_log_scales,
                   flow_s2, flow_t2, batch_tile=16))

    logp2_ref = _ref_log_rel_lik_E(x2.astype(jnp.float32), classes2, cond_means,
                                   cond_log_scales, flow_s2, flow_t2)
    assert jnp.allclose(logp2, logp2_ref, atol=5e-2, rtol=1e-3), (logp2, logp2_ref)
    assert jnp.allclose(loss2, -jnp.mean(logp2_ref), atol=5e-2, rtol=1e-3)

    # --- test 3: auto tile pick (single full-extent block at this small B) ----
    B3, D3 = 48, 128
    k1, k2, key = jax.random.split(key, 3)
    x3 = jax.random.normal(k1, (B3, D3), dtype=jnp.float32)
    classes3 = jax.random.randint(k2, (B3,), 0, C, dtype=jnp.int32)
    logp3 = jax.block_until_ready(
        calas_log_rel_lik_E(x3, classes3, cond_means, cond_log_scales,
                            flow_s2, flow_t2))
    loss3 = jax.block_until_ready(
        calas_loss(x3, classes3, cond_means, cond_log_scales,
                   flow_s2, flow_t2))
    logp3_ref = _ref_log_rel_lik_E(x3, classes3, cond_means, cond_log_scales,
                                   flow_s2, flow_t2)
    assert jnp.allclose(logp3, logp3_ref, atol=1e-2, rtol=1e-4)
    assert jnp.allclose(loss3, -jnp.mean(logp3_ref), atol=1e-2, rtol=1e-4)
    assert jnp.isfinite(loss) and jnp.isfinite(loss2) and jnp.isfinite(loss3)

    # TODO(synk): sample()/sample_E() (RNG draw from the conditional base dist)
    # and the jacrev-based loss_wrt_*_grad helpers are host-level wrappers (use
    # jax.grad around calas_loss); not part of the kernel hot path.
    print("KERNEL_OK")
</pallas_src>

<mosaic_0001>
module attributes {stable_mosaic.version = 11 : i64} {
  func.func @_calas_logp_kernel(%arg0: i32, %arg1: memref<8x32xf32, #tpu.memory_space<vmem>>, %arg2: memref<8x3xf32, #tpu.memory_space<vmem>>, %arg3: memref<1x32xf32, #tpu.memory_space<vmem>>, %arg4: memref<1x32xf32, #tpu.memory_space<vmem>>, %arg5: memref<8x1xf32, #tpu.memory_space<vmem>>) attributes {dimension_semantics = [#tpu.dimension_semantics<parallel>], iteration_bounds = array<i64: 1>, scalar_prefetch = 0 : i64, scratch_operands = 0 : i64, tpu.core_type = #tpu.core_type<tc>, window_params = [{transform_indices = @transform_0, window_bounds = array<i64: 8, 32>}, {transform_indices = @transform_1, window_bounds = array<i64: 8, 3>}, {pipeline_mode = #tpu.pipeline_mode<synchronous>, transform_indices = @transform_2, window_bounds = array<i64: 1, 32>}, {pipeline_mode = #tpu.pipeline_mode<synchronous>, transform_indices = @transform_3, window_bounds = array<i64: 1, 32>}, {transform_indices = @transform_4, window_bounds = array<i64: 8, 1>}]} {
    %c0 = arith.constant 0 : index
    %c0_0 = arith.constant 0 : index
    %0 = vector.load %arg1[%c0, %c0_0] : memref<8x32xf32, #tpu.memory_space<vmem>>, vector<8x32xf32>
    %c0_1 = arith.constant 0 : index
    %c0_2 = arith.constant 0 : index
    %1 = vector.load %arg3[%c0_1, %c0_2] : memref<1x32xf32, #tpu.memory_space<vmem>>, vector<1x32xf32>
    %2 = vector.broadcast %1 : vector<1x32xf32> to vector<8x32xf32>
    %3 = arith.mulf %0, %2 : vector<8x32xf32>
    %c0_3 = arith.constant 0 : index
    %c0_4 = arith.constant 0 : index
    %4 = vector.load %arg4[%c0_3, %c0_4] : memref<1x32xf32, #tpu.memory_space<vmem>>, vector<1x32xf32>
    %5 = vector.broadcast %4 : vector<1x32xf32> to vector<8x32xf32>
    %6 = arith.addf %3, %5 : vector<8x32xf32>
    %cst = arith.constant dense<0.000000e+00> : vector<8xf32>
    %7 = vector.multi_reduction <add>, %6, %cst [1] : vector<8x32xf32> to vector<8xf32>
    %8 = vector.shape_cast %7 : vector<8xf32> to vector<8x1xf32>
    %9 = arith.mulf %6, %6 : vector<8x32xf32>
    %cst_5 = arith.constant dense<0.000000e+00> : vector<8xf32>
    %10 = vector.multi_reduction <add>, %9, %cst_5 [1] : vector<8x32xf32> to vector<8xf32>
    %11 = vector.shape_cast %10 : vector<8xf32> to vector<8x1xf32>
    %c0_6 = arith.constant 0 : index
    %c0_7 = arith.constant 0 : index
    %12 = vector.load %arg2[%c0_6, %c0_7] : memref<8x3xf32, #tpu.memory_space<vmem>>, vector<8x3xf32>
    %13 = vector.extract_strided_slice %12 {offsets = [0, 0], sizes = [8, 1], strides = [1, 1]} : vector<8x3xf32> to vector<8x1xf32>
    %14 = vector.extract_strided_slice %12 {offsets = [0, 1], sizes = [8, 1], strides = [1, 1]} : vector<8x3xf32> to vector<8x1xf32>
    %15 = arith.mulf %14, %8 : vector<8x1xf32>
    %16 = arith.addf %13, %15 : vector<8x1xf32>
    %17 = vector.extract_strided_slice %12 {offsets = [0, 2], sizes = [8, 1], strides = [1, 1]} : vector<8x3xf32> to vector<8x1xf32>
    %18 = arith.mulf %17, %11 : vector<8x1xf32>
    %19 = arith.addf %16, %18 : vector<8x1xf32>
    %c0_8 = arith.constant 0 : index
    %c0_9 = arith.constant 0 : index
    %20 = vector.load %arg5[%c0_8, %c0_9] : memref<8x1xf32, #tpu.memory_space<vmem>>, vector<8x1xf32>
    tpu.vector_store %arg5[%c0_8, %c0_9], %19 {strides = array<i32>} : memref<8x1xf32, #tpu.memory_space<vmem>>, vector<8x1xf32>,
    return
  }
  func.func @transform_0(%arg0: i32) -> (i32, i32) {
    %c0_i32 = arith.constant 0 : i32
    %c0_i32_0 = arith.constant 0 : i32
    return %arg0, %c0_i32 : i32, i32
  }
  func.func @transform_1(%arg0: i32) -> (i32, i32) {
    %c0_i32 = arith.constant 0 : i32
    %c0_i32_0 = arith.constant 0 : i32
    return %arg0, %c0_i32 : i32, i32
  }
  func.func @transform_2(%arg0: i32) -> (i32, i32) {
    %c0_i32 = arith.constant 0 : i32
    %c0_i32_0 = arith.constant 0 : i32
    %c0_i32_1 = arith.constant 0 : i32
    return %c0_i32, %c0_i32_0 : i32, i32
  }
  func.func @transform_3(%arg0: i32) -> (i32, i32) {
    %c0_i32 = arith.constant 0 : i32
    %c0_i32_0 = arith.constant 0 : i32
    %c0_i32_1 = arith.constant 0 : i32
    return %c0_i32, %c0_i32_0 : i32, i32
  }
  func.func @transform_4(%arg0: i32) -> (i32, i32) {
    %c0_i32 = arith.constant 0 : i32
    %c0_i32_0 = arith.constant 0 : i32
    return %arg0, %c0_i32 : i32, i32
  }
}

</mosaic_0001>

<llo_original>
// kernel: tpu_custom_call.1
$region0: #{tpu_custom_call.1}
  #allocation0 [shape = 'u32[]', space=smem, size = 0x4, offset = 0x4, fixed_abs, tag = 'smem constant byte address 0x4 - core index']
  #allocation1 [shape = 'u32[144,128]{1,0:T(1,128)}', space=vmem, size = 0x12000, scoped, tag = 'internal scratch']
  %s0 = inlined_call_operand.vmem [shape: f32[8,32], index: 0, kind: input, shape index: {}]
  %s1 = inlined_call_operand.vmem [shape: f32[8,3], index: 1, kind: input, shape index: {}]
  %s2 = inlined_call_operand.vmem [shape: f32[1,32], index: 2, kind: input, shape index: {}]
  %s3 = inlined_call_operand.vmem [shape: f32[1,32], index: 3, kind: input, shape index: {}]
  %s4 = inlined_call_operand.vmem [shape: f32[8,1], index: 4, kind: output, shape index: {}]
  %s5 = sld [smem:[#allocation0]]
  $region26: #{tpu_custom_call.1} parent=0
    _
  %s7 = ssub.s32 1, %s5
  %s8 = scalar_select 0, %s7, %s5
  // Predicated region
  $region2: #{tpu_custom_call.1} parent=0 // pred_check
    _
  $region3: #{tpu_custom_call.1} parent=0 // pred_check_branch
    %10 = sbr.rel (0) target = $region5
  $region4: #{tpu_custom_call.1} parent=0 // pred_region
    _
  $region5: #{tpu_custom_call.1} parent=0 // pred_fallthru
    _
  // Predicated region
  $region6: #{tpu_custom_call.1} parent=0 // pred_check
    _
  $region7: #{tpu_custom_call.1} parent=0 // pred_check_branch
    %12 = sbr.rel (0) target = $region9
  $region8: #{tpu_custom_call.1} parent=0 // pred_region
    _
  $region9: #{tpu_custom_call.1} parent=0 // pred_fallthru
    _
  // Predicated region
  $region10: #{tpu_custom_call.1} parent=0 // pred_check
    _
  $region11: #{tpu_custom_call.1} parent=0 // pred_check_branch
    %14 = sbr.rel (0) target = $region13
  $region12: #{tpu_custom_call.1} parent=0 // pred_region
    _
  $region13: #{tpu_custom_call.1} parent=0 // pred_fallthru
    _
  // Predicated region
  $region14: #{tpu_custom_call.1} parent=0 // pred_check
    _
  $region15: #{tpu_custom_call.1} parent=0 // pred_check_branch
    %16 = sbr.rel (0) target = $region17
  $region16: #{tpu_custom_call.1} parent=0 // pred_region
    _
  $region17: #{tpu_custom_call.1} parent=0 // pred_fallthru
    _
  %v17 = vld [vmem:[%s0] sm:$0xff]
  %v18 = vld [vmem:[%s2] sm:$0x1]
  %v20 = vlaneseq
  %v21 = vshrl.u32 %v20, 7
  %v22 = vsub.s32 0, %v21
  %v23 = vrot.slane %v18, %v22
  %v25 = vmul.f32 %v17, %v23
  %v26 = vld [vmem:[%s3] sm:$0x1]
  %v28 = vlaneseq
  %v29 = vshrl.u32 %v28, 7
  %v30 = vsub.s32 0, %v29
  %v31 = vrot.slane %v26, %v30
  %v33 = vadd.f32 %v25, %v31
  %vm34 = vcmask 261120
  %v35 = vsel %vm34, %v33, 0.0
  %36 = vadd.xlane.f32.xlu0 %v35
  %v37 = vpop.xlane.xlu0 %36
  %v38 = vmul.f32 %v33, %v33
  %v39 = vsel %vm34, %v38, 0.0
  %40 = vadd.xlane.f32.xlu0 %v39
  %v41 = vpop.xlane.xlu0 %40
  %v42 = vld [vmem:[%s1] sm:$0xff]
  %v43 = vmul.f32 %v42, %v37
  %45 = vrot.lane.b32.xlu0 %v43, 127
  %v46 = vpop.permute.xlu0 %45
  %v48 = vadd.f32 %v42, %v46
  %v49 = vmul.f32 %v42, %v41
  %51 = vrot.lane.b32.xlu0 %v49, 126
  %v52 = vpop.permute.xlu0 %51
  %v54 = vadd.f32 %v48, %v52
  %vm55 = vcmask 7168
  %56 = vst.msk [vmem:[%s4] sm:$0xff] %vm55, %v54
  // Predicated region
  $region18: #{tpu_custom_call.1} parent=0 // pred_check
    _
  $region19: #{tpu_custom_call.1} parent=0 // pred_check_branch
    %58 = sbr.rel (0) target = $region21
  $region20: #{tpu_custom_call.1} parent=0 // pred_region
    _
  $region21: #{tpu_custom_call.1} parent=0 // pred_fallthru
    _
  // Predicated region
  $region22: #{tpu_custom_call.1} parent=0 // pred_check
    _
  $region23: #{tpu_custom_call.1} parent=0 // pred_check_branch
    %60 = sbr.rel (0) target = $region25
  $region24: #{tpu_custom_call.1} parent=0 // pred_region
    _
  $region25: #{tpu_custom_call.1} parent=0 // pred_fallthru
    _

</llo_original>
